<compile_context>
chip_gen: v7x
topology: tpu7x:2x2x1
jax: 0.10.0
libtpu: 0.0.40
codegen_flags: <defaults>
</compile_context>

<pallas_src>
import math
import functools

import jax
import jax.numpy as jnp
from jax import lax
from jax.experimental import pallas as pl
from jax.experimental.pallas import tpu as pltpu

LANE = 128
SUB = 16  # bf16 sublane packing -> keep batch tiles multiples of 16


def _round_up(n, m):
    return ((n + m - 1) // m) * m


def _default_tanh_bf16():
    """bf16 tanh only on chips with bf16 VPU/EUP (v6e / v7x); f32 elsewhere."""
    try:
        kind = jax.devices()[0].device_kind.lower()
        return ("v6" in kind) or ("v7" in kind)
    except Exception:
        return False


# ----------------------------------------------------------------------------
# Fused MLP kernel (all layers in one kernel body)
# ----------------------------------------------------------------------------
def _make_mlp_kernel(num_layers, tanh_bf16):
    """kernel(x_ref, w_0..w_{L-1}, b_pack_ref, o_ref)"""

    def kernel(*refs):
        x_ref = refs[0]
        w_refs = refs[1:1 + num_layers]
        b_ref = refs[1 + num_layers]
        o_ref = refs[2 + num_layers]

        h = x_ref[...]  # (bm, in_pad) bf16

        # Hidden layers: tanh(h @ W_k + b_k)
        for k in range(num_layers - 1):
            w = w_refs[k][...]
            width = w.shape[1]
            z = jnp.dot(h, w, preferred_element_type=jnp.float32)
            z = z + b_ref[k:k + 1, 0:width]            # (1, width) broadcasts over rows
            if tanh_bf16:
                h = jnp.tanh(z.astype(jnp.bfloat16))   # bf16 EUP (v6e/v7x)
            else:
                h = jnp.tanh(z).astype(jnp.bfloat16)   # f32 tanh (v5e-safe)

        # Output layer: softmax(h @ W_out + b_out) over the feature (lane) axis.
        # Padded logit columns already carry a -1e30 bias (set at pack time),
        # so they contribute exp(...) == 0 with no in-kernel masking code.
        w = w_refs[num_layers - 1][...]
        width = w.shape[1]
        z = jnp.dot(h, w, preferred_element_type=jnp.float32)
        z = z + b_ref[num_layers - 1:num_layers, 0:width]

        z_max = jnp.max(z, axis=-1, keepdims=True)
        e = jnp.exp(z - z_max)
        denom = jnp.sum(e, axis=-1, keepdims=True)
        o_ref[...] = (e / denom).astype(o_ref.dtype)   # exact softmax normalization

    return kernel


# ----------------------------------------------------------------------------
# Parameter init + packing (padding / bias packing hoisted out of forward)
# ----------------------------------------------------------------------------
def init_params(key, layers_size, out_size, weight_dtype=jnp.bfloat16):
    """Mirrors the PyTorch module: weights ~ N(0, 1/sqrt(100*len(layers_size))),
    biases = 0.  Weights are stored as (in, out) == PyTorch weight.T."""
    std = 1.0 / math.sqrt(100 * len(layers_size))
    dims = list(layers_size) + [out_size]
    params = []
    for k in range(len(dims) - 1):
        key, sub = jax.random.split(key)
        w = std * jax.random.normal(sub, (dims[k], dims[k + 1]), jnp.float32)
        params.append((w.astype(weight_dtype), jnp.zeros((dims[k + 1],), jnp.float32)))
    return params


def pack_params(params):
    """Zero-pad every weight to 128-multiple shapes, pack all biases into one
    (num_layers, max_width) f32 block, and bake the padded-logit mask into the
    output-layer bias row (-1e30 on padded columns)."""
    dims = [params[0][0].shape[0]] + [w.shape[1] for w, _ in params]
    padded = [_round_up(d, LANE) for d in dims]
    num_layers = len(params)
    bmax = max(padded[1:])

    w_pads = []
    b_pack = jnp.zeros((num_layers, bmax), jnp.float32)
    for k, (w, b) in enumerate(params):
        wp = jnp.zeros((padded[k], padded[k + 1]), w.dtype)
        wp = wp.at[:dims[k], :dims[k + 1]].set(w)
        w_pads.append(wp)
        b_pack = b_pack.at[k, :dims[k + 1]].set(b.astype(jnp.float32))
    # Mask padded output-logit columns through the bias (exp(-1e30 - max) == 0).
    b_pack = b_pack.at[num_layers - 1, dims[-1]:].set(-1e30)
    return tuple(w_pads), b_pack, tuple(dims)


# ----------------------------------------------------------------------------
# Forward pass (single fused pallas_call, batch-tiled grid)
# ----------------------------------------------------------------------------
@functools.partial(jax.jit, static_argnames=("dims", "batch_tile", "tanh_bf16"))
def net_forward(w_pads, b_pack, x, *, dims, batch_tile=1024, tanh_bf16=False):
    num_layers = len(w_pads)
    in_size, out_size = dims[0], dims[-1]
    in_pad = w_pads[0].shape[0]
    out_pad = w_pads[-1].shape[1]

    batch = x.shape[0]
    batch_sub = _round_up(batch, SUB)
    bm = min(batch_tile, batch_sub)
    # Guarantee >=2 batch tiles when possible so ("parallel",) can shard the
    # grid across both v7x TensorCores (neutral on v5e/v6e).
    if batch_sub // bm < 2 and batch_sub >= 2 * SUB:
        bm = _round_up(pl.cdiv(batch_sub, 2), SUB)
    batch_pad = _round_up(batch, bm)

    # Skip the full-array pad/copy when no padding is actually needed.
    if batch_pad == batch and in_pad == in_size:
        xp = x.astype(jnp.bfloat16)
    else:
        xp = jnp.pad(x.astype(jnp.bfloat16),
                     ((0, batch_pad - batch), (0, in_pad - in_size)))

    in_specs = [pl.BlockSpec((bm, in_pad), lambda i: (i, 0))]
    for wp in w_pads:
        # Constant index_map -> weights stay VMEM-resident across batch tiles.
        in_specs.append(pl.BlockSpec(wp.shape, lambda i: (0, 0)))
    in_specs.append(pl.BlockSpec(b_pack.shape, lambda i: (0, 0)))

    out = pl.pallas_call(
        _make_mlp_kernel(num_layers, tanh_bf16),
        out_shape=jax.ShapeDtypeStruct((batch_pad, out_pad), jnp.float32),
        grid=(batch_pad // bm,),
        in_specs=in_specs,
        out_specs=pl.BlockSpec((bm, out_pad), lambda i: (i, 0)),
        compiler_params=pltpu.CompilerParams(
            dimension_semantics=("parallel",),   # shards batch tiles across TCs (v7x)
            vmem_limit_bytes=32 * 1024 * 1024,   # safe on v7x's 64 MiB per-TC VMEM
        ),
    )(xp, *w_pads, b_pack)

    return out[:batch, :out_size]


# ----------------------------------------------------------------------------
# Pure-JAX reference (same bf16 weights / numeric path) for correctness check
# ----------------------------------------------------------------------------
def reference_forward(params, x, tanh_bf16=False):
    h = x.astype(jnp.bfloat16)
    for w, b in params[:-1]:
        z = jnp.dot(h, w, preferred_element_type=jnp.float32) + b
        if tanh_bf16:
            h = jnp.tanh(z.astype(jnp.bfloat16))
        else:
            h = jnp.tanh(z).astype(jnp.bfloat16)
    w, b = params[-1]
    z = jnp.dot(h, w, preferred_element_type=jnp.float32) + b
    return jax.nn.softmax(z, axis=1)


# ----------------------------------------------------------------------------
# Demo / smoke test
# ----------------------------------------------------------------------------
if __name__ == "__main__":
    # Small shapes consistent with the module's MLP structure.
    layers_size = [256, 128, 64, 32]
    out_size = 29
    batch = 8

    key = jax.random.PRNGKey(0)
    key, k_in = jax.random.split(key)
    x = jax.random.normal(k_in, (batch, layers_size[0]), dtype=jnp.float32)

    params = init_params(key, layers_size, out_size, weight_dtype=jnp.bfloat16)
    w_pads, b_pack, dims = pack_params(params)

    tanh_bf16 = _default_tanh_bf16()
    out = net_forward(w_pads, b_pack, x, dims=dims, tanh_bf16=tanh_bf16)
    out = jax.block_until_ready(out)

    assert out.shape == (batch, out_size)

    # Exact softmax division -> rows sum to ~1 tightly.
    row_sums = jnp.sum(out, axis=1)
    assert bool(jnp.all(jnp.abs(row_sums - 1.0) < 1e-5)), row_sums

    # Match the pure-JAX reference built from the same bf16 weights / math path.
    ref = reference_forward(params, x, tanh_bf16=tanh_bf16)
    assert bool(jnp.max(jnp.abs(out - ref)) < 1e-3)

    print("KERNEL_OK")
</pallas_src>

<mosaic_0001>
module attributes {stable_mosaic.version = 11 : i64} {
  func.func @kernel(%arg0: i32, %arg1: memref<16x256xbf16, #tpu.memory_space<vmem>>, %arg2: memref<256x128xbf16, #tpu.memory_space<vmem>>, %arg3: memref<128x128xbf16, #tpu.memory_space<vmem>>, %arg4: memref<128x128xbf16, #tpu.memory_space<vmem>>, %arg5: memref<128x128xbf16, #tpu.memory_space<vmem>>, %arg6: memref<4x128xf32, #tpu.memory_space<vmem>>, %arg7: memref<16x128xf32, #tpu.memory_space<vmem>>) attributes {dimension_semantics = [#tpu.dimension_semantics<parallel>], iteration_bounds = array<i64: 1>, scalar_prefetch = 0 : i64, scratch_operands = 0 : i64, tpu.core_type = #tpu.core_type<tc>, window_params = [{transform_indices = @transform_0, window_bounds = array<i64: 16, 256>}, {pipeline_mode = #tpu.pipeline_mode<synchronous>, transform_indices = @transform_1, window_bounds = array<i64: 256, 128>}, {pipeline_mode = #tpu.pipeline_mode<synchronous>, transform_indices = @transform_2, window_bounds = array<i64: 128, 128>}, {pipeline_mode = #tpu.pipeline_mode<synchronous>, transform_indices = @transform_3, window_bounds = array<i64: 128, 128>}, {pipeline_mode = #tpu.pipeline_mode<synchronous>, transform_indices = @transform_4, window_bounds = array<i64: 128, 128>}, {pipeline_mode = #tpu.pipeline_mode<synchronous>, transform_indices = @transform_5, window_bounds = array<i64: 4, 128>}, {transform_indices = @transform_6, window_bounds = array<i64: 16, 128>}]} {
    %c0 = arith.constant 0 : index
    %c0_0 = arith.constant 0 : index
    %0 = vector.load %arg1[%c0, %c0_0] : memref<16x256xbf16, #tpu.memory_space<vmem>>, vector<16x256xbf16>
    %c0_1 = arith.constant 0 : index
    %c0_2 = arith.constant 0 : index
    %1 = vector.load %arg2[%c0_1, %c0_2] : memref<256x128xbf16, #tpu.memory_space<vmem>>, vector<256x128xbf16>
    %cst = arith.constant dense<0.000000e+00> : vector<16x128xf32>
    %2 = tpu.matmul %0, %1, %cst {dimension_numbers = #tpu.dot_dimension_numbers<[1], [0], [0], [1], [0, 0, 1, 1], [], []>} : vector<16x256xbf16>, vector<256x128xbf16>, vector<16x128xf32> -> vector<16x128xf32>
    %c0_3 = arith.constant 0 : index
    %c0_4 = arith.constant 0 : index
    %3 = vector.load %arg6[%c0_3, %c0_4] : memref<4x128xf32, #tpu.memory_space<vmem>>, vector<1x128xf32>
    %4 = vector.broadcast %3 : vector<1x128xf32> to vector<16x128xf32>
    %5 = arith.addf %2, %4 : vector<16x128xf32>
    %6 = math.tanh %5 : vector<16x128xf32>
    %7 = arith.truncf %6 : vector<16x128xf32> to vector<16x128xbf16>
    %c0_5 = arith.constant 0 : index
    %c0_6 = arith.constant 0 : index
    %8 = vector.load %arg3[%c0_5, %c0_6] : memref<128x128xbf16, #tpu.memory_space<vmem>>, vector<128x128xbf16>
    %cst_7 = arith.constant dense<0.000000e+00> : vector<16x128xf32>
    %9 = tpu.matmul %7, %8, %cst_7 {dimension_numbers = #tpu.dot_dimension_numbers<[1], [0], [0], [1], [0, 0, 1, 1], [], []>} : vector<16x128xbf16>, vector<128x128xbf16>, vector<16x128xf32> -> vector<16x128xf32>
    %c1 = arith.constant 1 : index
    %c0_8 = arith.constant 0 : index
    %10 = vector.load %arg6[%c1, %c0_8] : memref<4x128xf32, #tpu.memory_space<vmem>>, vector<1x128xf32>
    %11 = vector.broadcast %10 : vector<1x128xf32> to vector<16x128xf32>
    %12 = arith.addf %9, %11 : vector<16x128xf32>
    %13 = math.tanh %12 : vector<16x128xf32>
    %14 = arith.truncf %13 : vector<16x128xf32> to vector<16x128xbf16>
    %c0_9 = arith.constant 0 : index
    %c0_10 = arith.constant 0 : index
    %15 = vector.load %arg4[%c0_9, %c0_10] : memref<128x128xbf16, #tpu.memory_space<vmem>>, vector<128x128xbf16>
    %cst_11 = arith.constant dense<0.000000e+00> : vector<16x128xf32>
    %16 = tpu.matmul %14, %15, %cst_11 {dimension_numbers = #tpu.dot_dimension_numbers<[1], [0], [0], [1], [0, 0, 1, 1], [], []>} : vector<16x128xbf16>, vector<128x128xbf16>, vector<16x128xf32> -> vector<16x128xf32>
    %c2 = arith.constant 2 : index
    %c0_12 = arith.constant 0 : index
    %17 = vector.load %arg6[%c2, %c0_12] : memref<4x128xf32, #tpu.memory_space<vmem>>, vector<1x128xf32>
    %18 = vector.broadcast %17 : vector<1x128xf32> to vector<16x128xf32>
    %19 = arith.addf %16, %18 : vector<16x128xf32>
    %20 = math.tanh %19 : vector<16x128xf32>
    %21 = arith.truncf %20 : vector<16x128xf32> to vector<16x128xbf16>
    %c0_13 = arith.constant 0 : index
    %c0_14 = arith.constant 0 : index
    %22 = vector.load %arg5[%c0_13, %c0_14] : memref<128x128xbf16, #tpu.memory_space<vmem>>, vector<128x128xbf16>
    %cst_15 = arith.constant dense<0.000000e+00> : vector<16x128xf32>
    %23 = tpu.matmul %21, %22, %cst_15 {dimension_numbers = #tpu.dot_dimension_numbers<[1], [0], [0], [1], [0, 0, 1, 1], [], []>} : vector<16x128xbf16>, vector<128x128xbf16>, vector<16x128xf32> -> vector<16x128xf32>
    %c3 = arith.constant 3 : index
    %c0_16 = arith.constant 0 : index
    %24 = vector.load %arg6[%c3, %c0_16] : memref<4x128xf32, #tpu.memory_space<vmem>>, vector<1x128xf32>
    %25 = vector.broadcast %24 : vector<1x128xf32> to vector<16x128xf32>
    %26 = arith.addf %23, %25 : vector<16x128xf32>
    %cst_17 = arith.constant dense<0xFF800000> : vector<16xf32>
    %27 = vector.multi_reduction <maximumf>, %26, %cst_17 [1] : vector<16x128xf32> to vector<16xf32>
    %28 = vector.shape_cast %27 : vector<16xf32> to vector<16x1xf32>
    %29 = vector.broadcast %28 : vector<16x1xf32> to vector<16x128xf32>
    %30 = arith.subf %26, %29 : vector<16x128xf32>
    %31 = math.exp %30 : vector<16x128xf32>
    %cst_18 = arith.constant dense<0.000000e+00> : vector<16xf32>
    %32 = vector.multi_reduction <add>, %31, %cst_18 [1] : vector<16x128xf32> to vector<16xf32>
    %33 = vector.shape_cast %32 : vector<16xf32> to vector<16x1xf32>
    %34 = vector.broadcast %33 : vector<16x1xf32> to vector<16x128xf32>
    %35 = arith.divf %31, %34 : vector<16x128xf32>
    %c0_19 = arith.constant 0 : index
    %c0_20 = arith.constant 0 : index
    %36 = vector.load %arg7[%c0_19, %c0_20] : memref<16x128xf32, #tpu.memory_space<vmem>>, vector<16x128xf32>
    tpu.vector_store %arg7[%c0_19, %c0_20], %35 {strides = array<i32>} : memref<16x128xf32, #tpu.memory_space<vmem>>, vector<16x128xf32>,
    return
  }
  func.func @transform_0(%arg0: i32) -> (i32, i32) {
    %c0_i32 = arith.constant 0 : i32
    %c0_i32_0 = arith.constant 0 : i32
    return %arg0, %c0_i32 : i32, i32
  }
  func.func @transform_1(%arg0: i32) -> (i32, i32) {
    %c0_i32 = arith.constant 0 : i32
    %c0_i32_0 = arith.constant 0 : i32
    %c0_i32_1 = arith.constant 0 : i32
    return %c0_i32, %c0_i32_0 : i32, i32
  }
  func.func @transform_2(%arg0: i32) -> (i32, i32) {
    %c0_i32 = arith.constant 0 : i32
    %c0_i32_0 = arith.constant 0 : i32
    %c0_i32_1 = arith.constant 0 : i32
    return %c0_i32, %c0_i32_0 : i32, i32
  }
  func.func @transform_3(%arg0: i32) -> (i32, i32) {
    %c0_i32 = arith.constant 0 : i32
    %c0_i32_0 = arith.constant 0 : i32
    %c0_i32_1 = arith.constant 0 : i32
    return %c0_i32, %c0_i32_0 : i32, i32
  }
  func.func @transform_4(%arg0: i32) -> (i32, i32) {
    %c0_i32 = arith.constant 0 : i32
    %c0_i32_0 = arith.constant 0 : i32
    %c0_i32_1 = arith.constant 0 : i32
    return %c0_i32, %c0_i32_0 : i32, i32
  }
  func.func @transform_5(%arg0: i32) -> (i32, i32) {
    %c0_i32 = arith.constant 0 : i32
    %c0_i32_0 = arith.constant 0 : i32
    %c0_i32_1 = arith.constant 0 : i32
    return %c0_i32, %c0_i32_0 : i32, i32
  }
  func.func @transform_6(%arg0: i32) -> (i32, i32) {
    %c0_i32 = arith.constant 0 : i32
    %c0_i32_0 = arith.constant 0 : i32
    return %arg0, %c0_i32 : i32, i32
  }
}

</mosaic_0001>

<llo_original>
// kernel: net_forward.1
$region0: #{net_forward.1}
  #allocation0 [shape = 'u32[]', space=smem, size = 0x4, offset = 0x4, fixed_abs, tag = 'smem constant byte address 0x4 - core index']
  #allocation1 [shape = 'u32[144,128]{1,0:T(1,128)}', space=vmem, size = 0x12000, scoped, tag = 'internal scratch']
  %s0 = inlined_call_operand.vmem [shape: bf16[16,256], index: 0, kind: input, shape index: {}]
  %s1 = inlined_call_operand.hbm [shape: bf16[256,128], index: 1, kind: input, shape index: {}]
  %s2 = inlined_call_operand.hbm [shape: bf16[128,128], index: 2, kind: input, shape index: {}]
  %s3 = inlined_call_operand.hbm [shape: bf16[128,128], index: 3, kind: input, shape index: {}]
  %s4 = inlined_call_operand.hbm [shape: bf16[128,128], index: 4, kind: input, shape index: {}]
  %s5 = inlined_call_operand.vmem [shape: f32[4,128], index: 5, kind: input, shape index: {}]
  %s6 = inlined_call_operand.vmem [shape: f32[16,128], index: 6, kind: output, shape index: {}]
  %s7 = sld [smem:[#allocation0]]
  $region50: #{net_forward.1} parent=0
    _
  %s9 = ssub.s32 1, %s7
  %s10 = scalar_select 0, %s9, %s7
  $region1: #{net_forward.1} parent=0
    #allocation2 [shape = 'u8[65536]{0}', space=vmem, size = 0x10000, scoped, tag = 'input window, operand 1, single buffered']
    #allocation3 [shape = 's32[1]{0}', space=sflag, size = 0x4, scoped, tag = 'scoped memory for net_forward.1']
    #allocation4 [shape = 'u8[32768]{0}', space=vmem, size = 0x8000, scoped, tag = 'input window, operand 2, single buffered']
    #allocation5 [shape = 's32[1]{0}', space=sflag, size = 0x4, scoped, tag = 'scoped memory for net_forward.1']
    #allocation6 [shape = 'u8[32768]{0}', space=vmem, size = 0x8000, scoped, tag = 'input window, operand 3, single buffered']
    #allocation7 [shape = 'u8[32768]{0}', space=vmem, size = 0x8000, scoped, tag = 'input window, operand 4, single buffered']
    #allocation8 [shape = 's32[1]{0}', space=sflag, size = 0x4, scoped, tag = 'scoped memory for net_forward.1']
    %11 = vsyncpa [#allocation3], 0
    %12 = vsyncpa [#allocation5], 0
    %13 = vsyncpa [#allocation8], 0
    // Predicated region
    $region2: #{net_forward.1} parent=1 // pred_check
      _
    $region3: #{net_forward.1} parent=1 // pred_check_branch
      %15 = sbr.rel (0) target = $region5
    $region4: #{net_forward.1} parent=1 // pred_region
      _
    $region5: #{net_forward.1} parent=1 // pred_fallthru
      _
    // Predicated region
    $region6: #{net_forward.1} parent=1 // pred_check
      _
    $region7: #{net_forward.1} parent=1 // pred_check_branch
      %17 = sbr.rel (0) target = $region9
    $region8: #{net_forward.1} parent=1 // pred_region
      %s19 = ssub.s32 2048, 2048
      %20 = vsyncadd [#allocation3], %s19
      %s21 = sshll.u32 [#allocation2], 4
      %s22 = int_to_ptr.vmem [resolvable:$true] %s21
      %27 = dma.hbm_to_vmem [thread:$0]  %s1, 2048, %s22, [#allocation3], 64, 64, 4
    $region9: #{net_forward.1} parent=1 // pred_fallthru
      _
    // Predicated region
    $region10: #{net_forward.1} parent=1 // pred_check
      _
    $region11: #{net_forward.1} parent=1 // pred_check_branch
      %29 = sbr.rel (0) target = $region13
    $region12: #{net_forward.1} parent=1 // pred_region
      %s31 = ssub.s32 1024, 1024
      %32 = vsyncadd [#allocation5], %s31
      %s33 = sshll.u32 [#allocation4], 4
      %s34 = int_to_ptr.vmem [resolvable:$true] %s33
      %39 = dma.hbm_to_vmem [thread:$0]  %s2, 1024, %s34, [#allocation5], 64, 64, 4
    $region13: #{net_forward.1} parent=1 // pred_fallthru
      _
    // Predicated region
    $region14: #{net_forward.1} parent=1 // pred_check
      _
    $region15: #{net_forward.1} parent=1 // pred_check_branch
      %41 = sbr.rel (0) target = $region17
    $region16: #{net_forward.1} parent=1 // pred_region
      %s43 = ssub.s32 1024, 1024
      %44 = vsyncadd [#allocation5], %s43
      %s45 = sshll.u32 [#allocation6], 4
      %s46 = int_to_ptr.vmem [resolvable:$true] %s45
      %51 = dma.hbm_to_vmem [thread:$0]  %s3, 1024, %s46, [#allocation5], 64, 64, 4
    $region17: #{net_forward.1} parent=1 // pred_fallthru
      _
    // Predicated region
    $region18: #{net_forward.1} parent=1 // pred_check
      _
    $region19: #{net_forward.1} parent=1 // pred_check_branch
      %53 = sbr.rel (0) target = $region21
    $region20: #{net_forward.1} parent=1 // pred_region
      %s55 = ssub.s32 1024, 1024
      %56 = vsyncadd [#allocation8], %s55
      %s57 = sshll.u32 [#allocation7], 4
      %s58 = int_to_ptr.vmem [resolvable:$true] %s57
      %63 = dma.hbm_to_vmem [thread:$0]  %s4, 1024, %s58, [#allocation8], 64, 64, 4
    $region21: #{net_forward.1} parent=1 // pred_fallthru
      _
    // Predicated region
    $region22: #{net_forward.1} parent=1 // pred_check
      _
    $region23: #{net_forward.1} parent=1 // pred_check_branch
      %65 = sbr.rel (0) target = $region25
    $region24: #{net_forward.1} parent=1 // pred_region
      _
    $region25: #{net_forward.1} parent=1 // pred_fallthru
      _
    // Predicated region
    $region26: #{net_forward.1} parent=1 // pred_check
      _
    $region27: #{net_forward.1} parent=1 // pred_check_branch
      %67 = sbr.rel (0) target = $region29
    $region28: #{net_forward.1} parent=1 // pred_region
      %68 = dma.done [#allocation3], 2048
    $region29: #{net_forward.1} parent=1 // pred_fallthru
      _
    // Predicated region
    $region30: #{net_forward.1} parent=1 // pred_check
      _
    $region31: #{net_forward.1} parent=1 // pred_check_branch
      %70 = sbr.rel (0) target = $region33
    $region32: #{net_forward.1} parent=1 // pred_region
      %71 = dma.done [#allocation5], 1024
    $region33: #{net_forward.1} parent=1 // pred_fallthru
      _
    // Predicated region
    $region34: #{net_forward.1} parent=1 // pred_check
      _
    $region35: #{net_forward.1} parent=1 // pred_check_branch
      %73 = sbr.rel (0) target = $region37
    $region36: #{net_forward.1} parent=1 // pred_region
      %74 = dma.done [#allocation5], 1024
    $region37: #{net_forward.1} parent=1 // pred_fallthru
      _
    // Predicated region
    $region38: #{net_forward.1} parent=1 // pred_check
      _
    $region39: #{net_forward.1} parent=1 // pred_check_branch
      %76 = sbr.rel (0) target = $region41
    $region40: #{net_forward.1} parent=1 // pred_region
      %77 = dma.done [#allocation8], 1024
    $region41: #{net_forward.1} parent=1 // pred_fallthru
      _
    %v79 = vld [vmem:[%s0] sm:$0xff]
    %v80 = vld [vmem:[%s0 + $0x8] sm:$0xff]
    %v81 = vld [vmem:[#allocation2] sm:$0xf]
    %v82 = vld [vmem:[#allocation2 + $0x4] sm:$0xf]
    %v83 = vld [vmem:[#allocation2 + $0x8] sm:$0xf]
    %v84 = vld [vmem:[#allocation2 + $0xc] sm:$0xf]
    %v85 = vld [vmem:[#allocation2 + $0x10] sm:$0xf]
    %v86 = vld [vmem:[#allocation2 + $0x14] sm:$0xf]
    %v87 = vld [vmem:[#allocation2 + $0x18] sm:$0xf]
    %v88 = vld [vmem:[#allocation2 + $0x1c] sm:$0xf]
    %v89 = vld [vmem:[#allocation2 + $0x20] sm:$0xf]
    %v90 = vld [vmem:[#allocation2 + $0x24] sm:$0xf]
    %v91 = vld [vmem:[#allocation2 + $0x28] sm:$0xf]
    %v92 = vld [vmem:[#allocation2 + $0x2c] sm:$0xf]
    %v93 = vld [vmem:[#allocation2 + $0x30] sm:$0xf]
    %v94 = vld [vmem:[#allocation2 + $0x34] sm:$0xf]
    %v95 = vld [vmem:[#allocation2 + $0x38] sm:$0xf]
    %v96 = vld [vmem:[#allocation2 + $0x3c] sm:$0xf]
    %v97 = vld [vmem:[#allocation2 + $0x40] sm:$0xf]
    %v98 = vld [vmem:[#allocation2 + $0x44] sm:$0xf]
    %v99 = vld [vmem:[#allocation2 + $0x48] sm:$0xf]
    %v100 = vld [vmem:[#allocation2 + $0x4c] sm:$0xf]
    %v101 = vld [vmem:[#allocation2 + $0x50] sm:$0xf]
    %v102 = vld [vmem:[#allocation2 + $0x54] sm:$0xf]
    %v103 = vld [vmem:[#allocation2 + $0x58] sm:$0xf]
    %v104 = vld [vmem:[#allocation2 + $0x5c] sm:$0xf]
    %v105 = vld [vmem:[#allocation2 + $0x60] sm:$0xf]
    %v106 = vld [vmem:[#allocation2 + $0x64] sm:$0xf]
    %v107 = vld [vmem:[#allocation2 + $0x68] sm:$0xf]
    %v108 = vld [vmem:[#allocation2 + $0x6c] sm:$0xf]
    %v109 = vld [vmem:[#allocation2 + $0x70] sm:$0xf]
    %v110 = vld [vmem:[#allocation2 + $0x74] sm:$0xf]
    %v111 = vld [vmem:[#allocation2 + $0x78] sm:$0xf]
    %v112 = vld [vmem:[#allocation2 + $0x7c] sm:$0xf]
    %v113 = vld [vmem:[%s5] sm:$0x1]
    %v114 = vlaneseq
    %v115 = vshrl.u32 %v114, 7
    %v116 = vsub.s32 0, %v115
    %v117 = vrot.slane %v113, %v116
    %v120 = vunpack.c.l.b16 %v79
    %v121 = vunpack.c.h.b16 %v79
    %v122 = vunpack.c.l.b16 %v80
    %v123 = vunpack.c.h.b16 %v80
    %v124 = vpack.c.b16 %v122, %v120
    %v125 = vpack.c.b16 %v123, %v121
    %v160 = vunpack.c.l.b16 %v81
    %v161 = vunpack.c.l.b16 %v82
    %v162 = vunpack.c.l.b16 %v83
    %v163 = vunpack.c.l.b16 %v84
    %v164 = vunpack.c.l.b16 %v85
    %v165 = vunpack.c.l.b16 %v86
    %v166 = vunpack.c.l.b16 %v87
    %v167 = vunpack.c.l.b16 %v88
    %v168 = vunpack.c.l.b16 %v89
    %v169 = vunpack.c.l.b16 %v90
    %v170 = vunpack.c.l.b16 %v91
    %v171 = vunpack.c.l.b16 %v92
    %v172 = vunpack.c.l.b16 %v93
    %v173 = vunpack.c.l.b16 %v94
    %v174 = vunpack.c.l.b16 %v95
    %v175 = vunpack.c.l.b16 %v96
    %v176 = vunpack.c.l.b16 %v97
    %v177 = vunpack.c.l.b16 %v98
    %v178 = vunpack.c.l.b16 %v99
    %v179 = vunpack.c.l.b16 %v100
    %v180 = vunpack.c.l.b16 %v101
    %v181 = vunpack.c.l.b16 %v102
    %v182 = vunpack.c.l.b16 %v103
    %v183 = vunpack.c.l.b16 %v104
    %v184 = vunpack.c.l.b16 %v105
    %v185 = vunpack.c.l.b16 %v106
    %v186 = vunpack.c.l.b16 %v107
    %v187 = vunpack.c.l.b16 %v108
    %v188 = vunpack.c.l.b16 %v109
    %v189 = vunpack.c.l.b16 %v110
    %v190 = vunpack.c.l.b16 %v111
    %v191 = vunpack.c.l.b16 %v112
    %v192 = vpack.c.b16 %v161, %v160
    %v193 = vpack.c.b16 %v163, %v162
    %v194 = vpack.c.b16 %v165, %v164
    %v195 = vpack.c.b16 %v167, %v166
    %v196 = vpack.c.b16 %v169, %v168
    %v197 = vpack.c.b16 %v171, %v170
    %v198 = vpack.c.b16 %v173, %v172
    %v199 = vpack.c.b16 %v175, %v174
    %v200 = vpack.c.b16 %v177, %v176
    %v201 = vpack.c.b16 %v179, %v178
    %v202 = vpack.c.b16 %v181, %v180
    %v203 = vpack.c.b16 %v183, %v182
    %v204 = vpack.c.b16 %v185, %v184
    %v205 = vpack.c.b16 %v187, %v186
    %v206 = vpack.c.b16 %v189, %v188
    %v207 = vpack.c.b16 %v191, %v190
    %224 = vmatprep.subr.bf16.mxu0 0
    %225 = vmatpush1.bf16.msra.mxu0 %v192
    %226 = vmatprep.subr.bf16.mxu0 0
    %227 = vmatpush1.bf16.msra.mxu0 %v193
    %228 = vmatprep.subr.bf16.mxu0 0
    %229 = vmatpush1.bf16.msra.mxu0 %v194
    %230 = vmatprep.subr.bf16.mxu0 0
    %231 = vmatpush1.bf16.msra.mxu0 %v195
    %232 = vmatprep.subr.bf16.mxu0 0
    %233 = vmatpush1.bf16.msra.mxu0 %v196
    %234 = vmatprep.subr.bf16.mxu0 0
    %235 = vmatpush1.bf16.msra.mxu0 %v197
    %236 = vmatprep.subr.bf16.mxu0 0
    %237 = vmatpush1.bf16.msra.mxu0 %v198
    %238 = vmatprep.subr.bf16.mxu0 0
    %239 = vmatpush1.bf16.msra.mxu0 %v199
    %240 = vmatprep.subr.bf16.mxu0 0
    %241 = vmatpush1.bf16.msra.mxu0 %v200
    %242 = vmatprep.subr.bf16.mxu0 0
    %243 = vmatpush1.bf16.msra.mxu0 %v201
    %244 = vmatprep.subr.bf16.mxu0 0
    %245 = vmatpush1.bf16.msra.mxu0 %v202
    %246 = vmatprep.subr.bf16.mxu0 0
    %247 = vmatpush1.bf16.msra.mxu0 %v203
    %248 = vmatprep.subr.bf16.mxu0 0
    %249 = vmatpush1.bf16.msra.mxu0 %v204
    %250 = vmatprep.subr.bf16.mxu0 0
    %251 = vmatpush1.bf16.msra.mxu0 %v205
    %252 = vmatprep.subr.bf16.mxu0 0
    %253 = vmatpush1.bf16.msra.mxu0 %v206
    %254 = vmatprep.subr.bf16.mxu0 0
    %255 = vmatpush1.bf16.msra.mxu0 %v207
    %256 = vmatprep.mubr.bf16.mxu0 %v125
    %257 = vmatmul.mubr.bf16.gmra.mrb[0].mxu0 %v124
    %v258 = vpop.f32.mrb[0].mxu0
    %v259 = vadd.f32 %v117, %v258
    %v260 = vpop.f32.mrb[0].mxu0
    %v261 = vpop.f32.mrb[0].mxu0
    %v262 = vadd.f32 %v117, %v261
    %v263 = vpop.f32.mrb[0].mxu0
    %264 = vdwg.mxu0
    %v265 = vtanh.pop %v259
    %v266 = vtanh.pop %v262
    %v267 = vpack.c.bf16 %v266, %v265
    %v268 = vld [vmem:[#allocation4] sm:$0xf]
    %v269 = vld [vmem:[#allocation4 + $0x4] sm:$0xf]
    %v270 = vld [vmem:[#allocation4 + $0x8] sm:$0xf]
    %v271 = vld [vmem:[#allocation4 + $0xc] sm:$0xf]
    %v272 = vld [vmem:[#allocation4 + $0x10] sm:$0xf]
    %v273 = vld [vmem:[#allocation4 + $0x14] sm:$0xf]
    %v274 = vld [vmem:[#allocation4 + $0x18] sm:$0xf]
    %v275 = vld [vmem:[#allocation4 + $0x1c] sm:$0xf]
    %v276 = vld [vmem:[#allocation4 + $0x20] sm:$0xf]
    %v277 = vld [vmem:[#allocation4 + $0x24] sm:$0xf]
    %v278 = vld [vmem:[#allocation4 + $0x28] sm:$0xf]
    %v279 = vld [vmem:[#allocation4 + $0x2c] sm:$0xf]
    %v280 = vld [vmem:[#allocation4 + $0x30] sm:$0xf]
    %v281 = vld [vmem:[#allocation4 + $0x34] sm:$0xf]
    %v282 = vld [vmem:[#allocation4 + $0x38] sm:$0xf]
    %v283 = vld [vmem:[#allocation4 + $0x3c] sm:$0xf]
    %v284 = vld [vmem:[%s5 + $0x1] sm:$0x1]
    %v285 = vlaneseq
    %v286 = vshrl.u32 %v285, 7
    %v287 = vsub.s32 0, %v286
    %v288 = vrot.slane %v284, %v287
    %v305 = vunpack.c.l.b16 %v268
    %v306 = vunpack.c.l.b16 %v269
    %v307 = vunpack.c.l.b16 %v270
    %v308 = vunpack.c.l.b16 %v271
    %v309 = vunpack.c.l.b16 %v272
    %v310 = vunpack.c.l.b16 %v273
    %v311 = vunpack.c.l.b16 %v274
    %v312 = vunpack.c.l.b16 %v275
    %v313 = vunpack.c.l.b16 %v276
    %v314 = vunpack.c.l.b16 %v277
    %v315 = vunpack.c.l.b16 %v278
    %v316 = vunpack.c.l.b16 %v279
    %v317 = vunpack.c.l.b16 %v280
    %v318 = vunpack.c.l.b16 %v281
    %v319 = vunpack.c.l.b16 %v282
    %v320 = vunpack.c.l.b16 %v283
    %v321 = vpack.c.b16 %v306, %v305
    %v322 = vpack.c.b16 %v308, %v307
    %v323 = vpack.c.b16 %v310, %v309
    %v324 = vpack.c.b16 %v312, %v311
    %v325 = vpack.c.b16 %v314, %v313
    %v326 = vpack.c.b16 %v316, %v315
    %v327 = vpack.c.b16 %v318, %v317
    %v328 = vpack.c.b16 %v320, %v319
    %337 = vmatprep.subr.bf16.mxu0 0
    %338 = vmatpush1.bf16.msra.mxu0 %v321
    %339 = vmatprep.subr.bf16.mxu0 0
    %340 = vmatpush1.bf16.msra.mxu0 %v322
    %341 = vmatprep.subr.bf16.mxu0 0
    %342 = vmatpush1.bf16.msra.mxu0 %v323
    %343 = vmatprep.subr.bf16.mxu0 0
    %344 = vmatpush1.bf16.msra.mxu0 %v324
    %345 = vmatprep.subr.bf16.mxu0 0
    %346 = vmatpush1.bf16.msra.mxu0 %v325
    %347 = vmatprep.subr.bf16.mxu0 0
    %348 = vmatpush1.bf16.msra.mxu0 %v326
    %349 = vmatprep.subr.bf16.mxu0 0
    %350 = vmatpush1.bf16.msra.mxu0 %v327
    %351 = vmatprep.subr.bf16.mxu0 0
    %352 = vmatpush1.bf16.msra.mxu0 %v328
    %353 = vmatprep.subr.bf16.mxu0 0
    %354 = vmatpush1.bf16.msra.mxu0 0
    %355 = vmatprep.subr.bf16.mxu0 0
    %356 = vmatpush1.bf16.msra.mxu0 0
    %357 = vmatprep.subr.bf16.mxu0 0
    %358 = vmatpush1.bf16.msra.mxu0 0
    %359 = vmatprep.subr.bf16.mxu0 0
    %360 = vmatpush1.bf16.msra.mxu0 0
    %361 = vmatprep.subr.bf16.mxu0 0
    %362 = vmatpush1.bf16.msra.mxu0 0
    %363 = vmatprep.subr.bf16.mxu0 0
    %364 = vmatpush1.bf16.msra.mxu0 0
    %365 = vmatprep.subr.bf16.mxu0 0
    %366 = vmatpush1.bf16.msra.mxu0 0
    %367 = vmatprep.subr.bf16.mxu0 0
    %368 = vmatpush1.bf16.msra.mxu0 0
    %369 = vmatprep.mubr.bf16.mxu0 0
    %370 = vmatmul.mubr.bf16.gmra.mrb[0].mxu0 %v267
    %v371 = vpop.f32.mrb[0].mxu0
    %v372 = vadd.f32 %v288, %v371
    %v373 = vpop.f32.mrb[0].mxu0
    %v374 = vpop.f32.mrb[0].mxu0
    %v375 = vadd.f32 %v288, %v374
    %v376 = vpop.f32.mrb[0].mxu0
    %377 = vdwg.mxu0
    %v378 = vtanh.pop %v372
    %v379 = vtanh.pop %v375
    %v380 = vpack.c.bf16 %v379, %v378
    %v381 = vld [vmem:[#allocation6] sm:$0xf]
    %v382 = vld [vmem:[#allocation6 + $0x4] sm:$0xf]
    %v383 = vld [vmem:[#allocation6 + $0x8] sm:$0xf]
    %v384 = vld [vmem:[#allocation6 + $0xc] sm:$0xf]
    %v385 = vld [vmem:[#allocation6 + $0x10] sm:$0xf]
    %v386 = vld [vmem:[#allocation6 + $0x14] sm:$0xf]
    %v387 = vld [vmem:[#allocation6 + $0x18] sm:$0xf]
    %v388 = vld [vmem:[#allocation6 + $0x1c] sm:$0xf]
    %v389 = vld [vmem:[#allocation6 + $0x20] sm:$0xf]
    %v390 = vld [vmem:[#allocation6 + $0x24] sm:$0xf]
    %v391 = vld [vmem:[#allocation6 + $0x28] sm:$0xf]
    %v392 = vld [vmem:[#allocation6 + $0x2c] sm:$0xf]
    %v393 = vld [vmem:[#allocation6 + $0x30] sm:$0xf]
    %v394 = vld [vmem:[#allocation6 + $0x34] sm:$0xf]
    %v395 = vld [vmem:[#allocation6 + $0x38] sm:$0xf]
    %v396 = vld [vmem:[#allocation6 + $0x3c] sm:$0xf]
    %v397 = vld [vmem:[%s5 + $0x2] sm:$0x1]
    %v398 = vlaneseq
    %v399 = vshrl.u32 %v398, 7
    %v400 = vsub.s32 0, %v399
    %v401 = vrot.slane %v397, %v400
    %v418 = vunpack.c.l.b16 %v381
    %v419 = vunpack.c.l.b16 %v382
    %v420 = vunpack.c.l.b16 %v383
    %v421 = vunpack.c.l.b16 %v384
    %v422 = vunpack.c.l.b16 %v385
    %v423 = vunpack.c.l.b16 %v386
    %v424 = vunpack.c.l.b16 %v387
    %v425 = vunpack.c.l.b16 %v388
    %v426 = vunpack.c.l.b16 %v389
    %v427 = vunpack.c.l.b16 %v390
    %v428 = vunpack.c.l.b16 %v391
    %v429 = vunpack.c.l.b16 %v392
    %v430 = vunpack.c.l.b16 %v393
    %v431 = vunpack.c.l.b16 %v394
    %v432 = vunpack.c.l.b16 %v395
    %v433 = vunpack.c.l.b16 %v396
    %v434 = vpack.c.b16 %v419, %v418
    %v435 = vpack.c.b16 %v421, %v420
    %v436 = vpack.c.b16 %v423, %v422
    %v437 = vpack.c.b16 %v425, %v424
    %v438 = vpack.c.b16 %v427, %v426
    %v439 = vpack.c.b16 %v429, %v428
    %v440 = vpack.c.b16 %v431, %v430
    %v441 = vpack.c.b16 %v433, %v432
    %450 = vmatprep.subr.bf16.mxu0 0
    %451 = vmatpush1.bf16.msra.mxu0 %v434
    %452 = vmatprep.subr.bf16.mxu0 0
    %453 = vmatpush1.bf16.msra.mxu0 %v435
    %454 = vmatprep.subr.bf16.mxu0 0
    %455 = vmatpush1.bf16.msra.mxu0 %v436
    %456 = vmatprep.subr.bf16.mxu0 0
    %457 = vmatpush1.bf16.msra.mxu0 %v437
    %458 = vmatprep.subr.bf16.mxu0 0
    %459 = vmatpush1.bf16.msra.mxu0 %v438
    %460 = vmatprep.subr.bf16.mxu0 0
    %461 = vmatpush1.bf16.msra.mxu0 %v439
    %462 = vmatprep.subr.bf16.mxu0 0
    %463 = vmatpush1.bf16.msra.mxu0 %v440
    %464 = vmatprep.subr.bf16.mxu0 0
    %465 = vmatpush1.bf16.msra.mxu0 %v441
    %466 = vmatprep.subr.bf16.mxu0 0
    %467 = vmatpush1.bf16.msra.mxu0 0
    %468 = vmatprep.subr.bf16.mxu0 0
    %469 = vmatpush1.bf16.msra.mxu0 0
    %470 = vmatprep.subr.bf16.mxu0 0
    %471 = vmatpush1.bf16.msra.mxu0 0
    %472 = vmatprep.subr.bf16.mxu0 0
    %473 = vmatpush1.bf16.msra.mxu0 0
    %474 = vmatprep.subr.bf16.mxu0 0
    %475 = vmatpush1.bf16.msra.mxu0 0
    %476 = vmatprep.subr.bf16.mxu0 0
    %477 = vmatpush1.bf16.msra.mxu0 0
    %478 = vmatprep.subr.bf16.mxu0 0
    %479 = vmatpush1.bf16.msra.mxu0 0
    %480 = vmatprep.subr.bf16.mxu0 0
    %481 = vmatpush1.bf16.msra.mxu0 0
    %482 = vmatprep.mubr.bf16.mxu0 0
    %483 = vmatmul.mubr.bf16.gmra.mrb[0].mxu0 %v380
    %v484 = vpop.f32.mrb[0].mxu0
    %v485 = vadd.f32 %v401, %v484
    %v486 = vpop.f32.mrb[0].mxu0
    %v487 = vpop.f32.mrb[0].mxu0
    %v488 = vadd.f32 %v401, %v487
    %v489 = vpop.f32.mrb[0].mxu0
    %490 = vdwg.mxu0
    %v491 = vtanh.pop %v485
    %v492 = vtanh.pop %v488
    %v493 = vpack.c.bf16 %v492, %v491
    %v494 = vld [vmem:[#allocation7] sm:$0xf]
    %v495 = vld [vmem:[#allocation7 + $0x4] sm:$0xf]
    %v496 = vld [vmem:[#allocation7 + $0x8] sm:$0xf]
    %v497 = vld [vmem:[#allocation7 + $0xc] sm:$0xf]
    %v498 = vld [vmem:[#allocation7 + $0x10] sm:$0xf]
    %v499 = vld [vmem:[#allocation7 + $0x14] sm:$0xf]
    %v500 = vld [vmem:[#allocation7 + $0x18] sm:$0xf]
    %v501 = vld [vmem:[#allocation7 + $0x1c] sm:$0xf]
    %v502 = vld [vmem:[#allocation7 + $0x20] sm:$0xf]
    %v503 = vld [vmem:[#allocation7 + $0x24] sm:$0xf]
    %v504 = vld [vmem:[#allocation7 + $0x28] sm:$0xf]
    %v505 = vld [vmem:[#allocation7 + $0x2c] sm:$0xf]
    %v506 = vld [vmem:[#allocation7 + $0x30] sm:$0xf]
    %v507 = vld [vmem:[#allocation7 + $0x34] sm:$0xf]
    %v508 = vld [vmem:[#allocation7 + $0x38] sm:$0xf]
    %v509 = vld [vmem:[#allocation7 + $0x3c] sm:$0xf]
    %v510 = vld [vmem:[%s5 + $0x3] sm:$0x1]
    %v511 = vlaneseq
    %v512 = vshrl.u32 %v511, 7
    %v513 = vsub.s32 0, %v512
    %v514 = vrot.slane %v510, %v513
    %v531 = vunpack.c.l.b16 %v494
    %v532 = vunpack.c.l.b16 %v495
    %v533 = vunpack.c.l.b16 %v496
    %v534 = vunpack.c.l.b16 %v497
    %v535 = vunpack.c.l.b16 %v498
    %v536 = vunpack.c.l.b16 %v499
    %v537 = vunpack.c.l.b16 %v500
    %v538 = vunpack.c.l.b16 %v501
    %v539 = vunpack.c.l.b16 %v502
    %v540 = vunpack.c.l.b16 %v503
    %v541 = vunpack.c.l.b16 %v504
    %v542 = vunpack.c.l.b16 %v505
    %v543 = vunpack.c.l.b16 %v506
    %v544 = vunpack.c.l.b16 %v507
    %v545 = vunpack.c.l.b16 %v508
    %v546 = vunpack.c.l.b16 %v509
    %v547 = vpack.c.b16 %v532, %v531
    %v548 = vpack.c.b16 %v534, %v533
    %v549 = vpack.c.b16 %v536, %v535
    %v550 = vpack.c.b16 %v538, %v537
    %v551 = vpack.c.b16 %v540, %v539
    %v552 = vpack.c.b16 %v542, %v541
    %v553 = vpack.c.b16 %v544, %v543
    %v554 = vpack.c.b16 %v546, %v545
    %563 = vmatprep.subr.bf16.mxu0 0
    %564 = vmatpush1.bf16.msra.mxu0 %v547
    %565 = vmatprep.subr.bf16.mxu0 0
    %566 = vmatpush1.bf16.msra.mxu0 %v548
    %567 = vmatprep.subr.bf16.mxu0 0
    %568 = vmatpush1.bf16.msra.mxu0 %v549
    %569 = vmatprep.subr.bf16.mxu0 0
    %570 = vmatpush1.bf16.msra.mxu0 %v550
    %571 = vmatprep.subr.bf16.mxu0 0
    %572 = vmatpush1.bf16.msra.mxu0 %v551
    %573 = vmatprep.subr.bf16.mxu0 0
    %574 = vmatpush1.bf16.msra.mxu0 %v552
    %575 = vmatprep.subr.bf16.mxu0 0
    %576 = vmatpush1.bf16.msra.mxu0 %v553
    %577 = vmatprep.subr.bf16.mxu0 0
    %578 = vmatpush1.bf16.msra.mxu0 %v554
    %579 = vmatprep.subr.bf16.mxu0 0
    %580 = vmatpush1.bf16.msra.mxu0 0
    %581 = vmatprep.subr.bf16.mxu0 0
    %582 = vmatpush1.bf16.msra.mxu0 0
    %583 = vmatprep.subr.bf16.mxu0 0
    %584 = vmatpush1.bf16.msra.mxu0 0
    %585 = vmatprep.subr.bf16.mxu0 0
    %586 = vmatpush1.bf16.msra.mxu0 0
    %587 = vmatprep.subr.bf16.mxu0 0
    %588 = vmatpush1.bf16.msra.mxu0 0
    %589 = vmatprep.subr.bf16.mxu0 0
    %590 = vmatpush1.bf16.msra.mxu0 0
    %591 = vmatprep.subr.bf16.mxu0 0
    %592 = vmatpush1.bf16.msra.mxu0 0
    %593 = vmatprep.subr.bf16.mxu0 0
    %594 = vmatpush1.bf16.msra.mxu0 0
    %595 = vmatprep.mubr.bf16.mxu0 0
    %596 = vmatmul.mubr.bf16.gmra.mrb[0].mxu0 %v493
    %v597 = vpop.f32.mrb[0].mxu0
    %v598 = vadd.f32 %v514, %v597
    %v599 = vpop.f32.mrb[0].mxu0
    %v600 = vpop.f32.mrb[0].mxu0
    %v601 = vadd.f32 %v514, %v600
    %v602 = vpop.f32.mrb[0].mxu0
    %603 = vdwg.mxu0
    %604 = vmax.xlane.f32.xlu0 %v598
    %v605 = vpop.xlane.xlu0 %604
    %606 = vmax.xlane.f32.xlu0 %v601
    %v607 = vpop.xlane.xlu0 %606
    %v608 = vsub.f32 %v598, %v605
    %v609 = vsub.f32 %v601, %v607
    %v610 = vmul.f32 %v608, 1.442695
    %v611 = vpow.pop %v610
    %v612 = vmul.f32 %v609, 1.442695
    %v613 = vpow.pop %v612
    %614 = vadd.xlane.f32.xlu0 %v611
    %v615 = vpop.xlane.xlu0 %614
    %616 = vadd.xlane.f32.xlu0 %v613
    %v617 = vpop.xlane.xlu0 %616
    %v618 = vrcp.pop %v615
    %v619 = vmul.f32 %v611, %v618
    %v620 = vrcp.pop %v617
    %v621 = vmul.f32 %v613, %v620
    %622 = vst [vmem:[%s6] sm:$0xff] %v619
    %623 = vst [vmem:[%s6 + $0x8] sm:$0xff] %v621
    // Predicated region
    $region42: #{net_forward.1} parent=1 // pred_check
      _
    $region43: #{net_forward.1} parent=1 // pred_check_branch
      %625 = sbr.rel (0) target = $region45
    $region44: #{net_forward.1} parent=1 // pred_region
      _
    $region45: #{net_forward.1} parent=1 // pred_fallthru
      _
    // Predicated region
    $region46: #{net_forward.1} parent=1 // pred_check
      _
    $region47: #{net_forward.1} parent=1 // pred_check_branch
      %627 = sbr.rel (0) target = $region49
    $region48: #{net_forward.1} parent=1 // pred_region
      _
    $region49: #{net_forward.1} parent=1 // pred_fallthru
      _
    %628 = vsyncpa [#allocation3], 1
    %629 = vsyncpa [#allocation5], 1
    %630 = vsyncpa [#allocation8], 1

</llo_original>
